<compile_context>
chip_gen: v6e
topology: v6e:2x2x1
jax: 0.10.0
libtpu: 0.0.40
codegen_flags: <defaults>
</compile_context>

<pallas_src>
import jax
import jax.numpy as jnp
from jax import lax
from jax.experimental import pallas as pl
from jax.experimental.pallas import tpu as pltpu

ALPHA = 0.3          # Tversky FP weight
BETA = 0.7           # Tversky FN weight
GAMMA = 0.75         # focal exponent
SMOOTH = 1.0         # tversky_kwargs['smooth']
TOPK_PERCENT = 15    # ce_kwargs['k']
IGNORE_INDEX = 0     # ce_kwargs['ignore_index']


def _tal_kernel(w_ref, x_ref, t_ref, m_ref, tp_ref, s1_ref, s2_ref, ce_ref):
    """One (sample i, spatial tile j) grid step.

    w_ref  : (C,)      f32 class weights, scalar-prefetched into SMEM (fetched once)
    x_ref  : (1,C,TP)  logits (f32 or bf16)
    t_ref  : (1,1,TP)  int32 labels
    m_ref  : (1,1,TP)  loss mask
    tp_ref : (1,1,C)   Σ sm·onehot·m   (VMEM-resident accumulator across P-tiles)
    s1_ref : (1,1,C)   Σ sm·m          (fp = s1 - tp, done in wrapper)
    s2_ref : (1,1,C)   Σ onehot·m      (fn = s2 - tp, done in wrapper)
    ce_ref : (1,1,TP)  per-voxel weighted CE (lane-dense output)
    """
    j = pl.program_id(1)

    # tp/s1/s2 out-blocks keep the same block index for every P-tile j, so they stay
    # resident in VMEM across the whole spatial reduction and are written back to HBM
    # only once per sample (no per-tile partial writeback of the narrow (1,1,C) stats).
    @pl.when(j == 0)
    def _init():
        tp_ref[...] = jnp.zeros_like(tp_ref)
        s1_ref[...] = jnp.zeros_like(s1_ref)
        s2_ref[...] = jnp.zeros_like(s2_ref)

    x = x_ref[...].astype(jnp.float32)     # upcast after the DMA (logits may be bf16)
    t = t_ref[...]                         # (1,1,TP) int32
    m = m_ref[...].astype(jnp.float32)     # (1,1,TP)
    C = x.shape[1]

    # softmax over the class (sublane) axis
    xmax = jnp.max(x, axis=1, keepdims=True)
    shifted = x - xmax
    ex = jnp.exp(shifted)
    denom = jnp.sum(ex, axis=1, keepdims=True)            # (1,1,TP)
    inv_denom = pl.reciprocal(denom, approx=True)         # EUP slot instead of f32 divide
    sm = ex * inv_denom                                   # softmax probabilities

    # one-hot of the target labels along the class axis
    cls = lax.broadcasted_iota(jnp.int32, x.shape, 1)     # (1,C,TP)
    onehot = (cls == t).astype(jnp.float32)               # broadcasts t over C

    # masked Tversky partial sums (lane reductions), accumulated across P-tiles
    smm = sm * m
    tp_ref[...] += jnp.sum(smm * onehot, axis=2).reshape(1, 1, C)
    s1_ref[...] += jnp.sum(smm, axis=2).reshape(1, 1, C)
    s2_ref[...] += jnp.sum(onehot * m, axis=2).reshape(1, 1, C)

    # per-voxel weighted cross-entropy without materializing a (C,TP) log-softmax:
    #   ce = -weight[y] * (shifted[y] - log(denom))
    tlab = t[:, 0, :]                                     # (1,TP)
    z_t = jnp.sum(onehot * shifted, axis=1)               # (1,TP)  shifted logit at target
    logden = jnp.log(denom)[:, 0, :]                      # (1,TP)
    w_t = jnp.zeros(tlab.shape, jnp.float32)
    for c in range(C):                                    # C is small & static -> unrolled
        w_t = w_t + jnp.where(tlab == c, w_ref[c], 0.0)   # SMEM scalar broadcast
    ce = -w_t * (z_t - logden)
    ce = jnp.where(tlab != IGNORE_INDEX, ce, 0.0)         # ignore_index -> zero loss
    ce_ref[...] = ce.reshape(1, 1, ce.shape[-1])


def _choose_tile(P, C, x_itemsize, tp_tile=None):
    """Pick the spatial tile TP (multiple of 128 dividing P, or P itself) and a
    scoped-VMEM limit. Generation-aware: the resident working set (double-buffered
    logits + targets + mask + CE-out tiles) is sized against the device VMEM
    capacity (64 MiB physical on v7x vs 128 MiB on v5e/v6e)."""
    try:
        vmem_cap = int(pltpu.get_tpu_info().vmem_capacity_bytes)
    except Exception:
        vmem_cap = 64 * 1024 * 1024            # conservative: v7x
    vmem_limit = int(min(vmem_cap // 2, 64 * 1024 * 1024))
    if tp_tile is not None:
        return int(tp_tile), vmem_limit
    # bytes per lane element per pipeline stage: logits(C*b) + targets(4) + mask(b)
    # + ce out(4); x2 for double buffering.
    per_lane = 2 * (C * x_itemsize + 4 + x_itemsize + 4)
    budget = vmem_limit // 2                   # headroom for scratch / regalloc
    tp_cap = max(128, (budget // per_lane) // 128 * 128)
    if P <= tp_cap:
        return int(P), vmem_limit              # whole spatial extent in one tile
    tp = 0
    for cand in range(128, int(tp_cap) + 1, 128):
        if P % cand == 0:
            tp = cand
    if tp == 0:
        tp = P                                 # no aligned divisor; single large tile
    return int(tp), vmem_limit


def _topk_mean(ce, k, iters=40):
    """Mean of the k largest entries of a 1-D vector without a full sort.

    Replaces lax.top_k (a full sort that dominates wall-clock at nnU-Net sizes) by a
    streaming threshold bisection (`iters` masked-count passes to locate the k-th
    largest value) plus one masked-sum pass. Matches the exact top-k mean to f32
    precision; ties at the threshold are absorbed by the (k - count)·thr term."""
    # TODO(synk): the bisection counts could be fused into the Pallas P-tiles as
    # per-tile histograms; kept in plain JAX here (simple streaming reductions).
    ce = ce.astype(jnp.float32)
    kf = jnp.float32(k)
    lo = jnp.min(ce)
    hi = jnp.max(ce)

    def body(_, carry):
        lo, hi = carry
        mid = 0.5 * (lo + hi)
        cnt = jnp.sum((ce >= mid).astype(jnp.float32))
        ge_k = cnt >= kf
        return jnp.where(ge_k, mid, lo), jnp.where(ge_k, hi, mid)

    lo, hi = lax.fori_loop(0, iters, body, (lo, hi))
    thr = lo                                   # ~ k-th largest value
    above = (ce > thr).astype(jnp.float32)
    cnt_gt = jnp.sum(above)
    sum_gt = jnp.sum(ce * above)
    return (sum_gt + (kf - cnt_gt) * thr) / kf


def tal_loss(outputs, targets, mask, weight, *, tp_tile=None):
    """outputs: (N,C,H,W) logits (f32 or bf16 — bf16 is fed through unconverted)
       targets: (N,1,H,W) integer segmentation labels
       mask:    (N,1,H,W) loss mask (gates the Tversky statistics only)
       weight:  (C,) per-class CE weights"""
    N, C, H, W = outputs.shape
    P = H * W

    x = outputs.reshape(N, C, P)
    if x.dtype != jnp.bfloat16:                # keep bf16 logits as bf16 (HBM traffic)
        x = x.astype(jnp.float32)
    t = targets.reshape(N, 1, P).astype(jnp.int32)
    m = mask.reshape(N, 1, P).astype(x.dtype)
    w = jnp.asarray(weight, jnp.float32).reshape(C)   # scalar-prefetched into SMEM

    TP, vmem_limit = _choose_tile(P, C, x.dtype.itemsize, tp_tile)
    assert P % TP == 0, "spatial extent must be divisible by the chosen tile"

    out_shapes = (
        jax.ShapeDtypeStruct((N, 1, C), jnp.float32),   # tp
        jax.ShapeDtypeStruct((N, 1, C), jnp.float32),   # s1 = Σ sm·m
        jax.ShapeDtypeStruct((N, 1, C), jnp.float32),   # s2 = Σ onehot·m
        jax.ShapeDtypeStruct((N, 1, P), jnp.float32),   # per-voxel CE
    )

    stat_spec = pl.BlockSpec((1, 1, C), lambda i, j, w: (i, 0, 0))
    grid_spec = pltpu.PrefetchScalarGridSpec(
        num_scalar_prefetch=1,                 # class weights -> SMEM, fetched once
        grid=(N, P // TP),                     # reduction (P) axis last, "arbitrary"
        in_specs=[
            pl.BlockSpec((1, C, TP), lambda i, j, w: (i, 0, j)),   # logits
            pl.BlockSpec((1, 1, TP), lambda i, j, w: (i, 0, j)),   # targets
            pl.BlockSpec((1, 1, TP), lambda i, j, w: (i, 0, j)),   # mask
        ],
        out_specs=[
            stat_spec, stat_spec, stat_spec,
            pl.BlockSpec((1, 1, TP), lambda i, j, w: (i, 0, j)),   # CE (lane-dense)
        ],
    )

    # N is the megacore "parallel" axis (v7x: with N>=2 both TensorCores get work);
    # the P-tile axis is the in-place reduction ("arbitrary").
    tp, s1, s2, ce = pl.pallas_call(
        _tal_kernel,
        out_shape=out_shapes,
        grid_spec=grid_spec,
        compiler_params=pltpu.CompilerParams(
            dimension_semantics=("parallel", "arbitrary"),
            vmem_limit_bytes=vmem_limit,
        ),
    )(w, x, t, m)

    tp = tp.reshape(N, C)
    fp = s1.reshape(N, C) - tp
    fn = s2.reshape(N, C) - tp

    # Focal Tversky (batch_dice=False -> per-sample/per-class; do_bg=True -> keep class 0)
    tversky = (tp + SMOOTH) / (tp + ALPHA * fp + BETA * fn + SMOOTH)
    focal_tversky = (1.0 - jnp.mean(tversky)) ** GAMMA

    # TopK cross-entropy: mean of the top 15% per-voxel CE values (sort-free selection)
    n_top = max(1, int(N * P * TOPK_PERCENT / 100))
    ce_loss = _topk_mean(ce.reshape(N * P), n_top)

    return ce_loss + focal_tversky


if __name__ == "__main__":
    key = jax.random.PRNGKey(0)
    N, C, H, W = 2, 4, 16, 16
    k1, k2, k3 = jax.random.split(key, 3)

    outputs = jax.random.normal(k1, (N, C, H, W), dtype=jnp.float32)
    targets = jax.random.randint(k2, (N, 1, H, W), 0, C).astype(jnp.int32)
    mask = (jax.random.uniform(k3, (N, 1, H, W)) > 0.1).astype(jnp.float32)
    weight = jnp.array([0.5, 1.0, 1.5, 2.0], dtype=jnp.float32)

    # Forced small tile -> two spatial tiles per sample: exercises the cross-tile
    # accumulator path (init at j==0, VMEM-resident stats, single final writeback).
    loss_tiled = tal_loss(outputs, targets, mask, weight, tp_tile=128)
    jax.block_until_ready(loss_tiled)
    assert loss_tiled.shape == () and bool(jnp.isfinite(loss_tiled))

    # Auto-sized tile (single P-tile at this toy size) must agree with the tiled run.
    loss_auto = tal_loss(outputs, targets, mask, weight)
    jax.block_until_ready(loss_auto)
    assert bool(jnp.allclose(loss_tiled, loss_auto, rtol=2e-4, atol=2e-4))

    # Sanity-check the sort-free top-k mean against lax.top_k at toy size.
    v = jax.random.normal(jax.random.PRNGKey(1), (512,), dtype=jnp.float32)
    exact = jnp.mean(lax.top_k(v, 76)[0])
    approx = _topk_mean(v, 76)
    assert bool(jnp.allclose(exact, approx, rtol=1e-5, atol=1e-5))

    print("KERNEL_OK")
</pallas_src>

<mosaic_0001>
module attributes {stable_mosaic.version = 11 : i64} {
  func.func @_tal_kernel(%arg0: i32, %arg1: i32, %arg2: memref<4xf32, #tpu.memory_space<smem>>, %arg3: memref<1x4x128xf32, #tpu.memory_space<vmem>>, %arg4: memref<1x1x128xi32, #tpu.memory_space<vmem>>, %arg5: memref<1x1x128xf32, #tpu.memory_space<vmem>>, %arg6: memref<1x1x4xf32, #tpu.memory_space<vmem>>, %arg7: memref<1x1x4xf32, #tpu.memory_space<vmem>>, %arg8: memref<1x1x4xf32, #tpu.memory_space<vmem>>, %arg9: memref<1x1x128xf32, #tpu.memory_space<vmem>>) attributes {dimension_semantics = [#tpu.dimension_semantics<parallel>, #tpu.dimension_semantics<arbitrary>], iteration_bounds = array<i64: 2, 2>, scalar_prefetch = 1 : i64, scratch_operands = 0 : i64, tpu.core_type = #tpu.core_type<tc>, window_params = [{transform_indices = @transform_0, window_bounds = array<i64: 1, 4, 128>}, {transform_indices = @transform_1, window_bounds = array<i64: 1, 1, 128>}, {transform_indices = @transform_2, window_bounds = array<i64: 1, 1, 128>}, {transform_indices = @transform_3, window_bounds = array<i64: 1, 1, 4>}, {transform_indices = @transform_4, window_bounds = array<i64: 1, 1, 4>}, {transform_indices = @transform_5, window_bounds = array<i64: 1, 1, 4>}, {transform_indices = @transform_6, window_bounds = array<i64: 1, 1, 128>}]} {
    %c0_i32 = arith.constant 0 : i32
    %0 = arith.cmpi eq, %arg1, %c0_i32 : i32
    %1 = arith.extui %0 : i1 to i32
    %c0_i32_0 = arith.constant 0 : i32
    %2 = arith.cmpi ne, %1, %c0_i32_0 : i32
    scf.if %2 {
      %cst_45 = arith.constant 0.000000e+00 : f32
      %85 = vector.broadcast %cst_45 : f32 to vector<1x1x4xf32>
      %c0_46 = arith.constant 0 : index
      %c0_47 = arith.constant 0 : index
      %c0_48 = arith.constant 0 : index
      %86 = vector.load %arg6[%c0_46, %c0_47, %c0_48] : memref<1x1x4xf32, #tpu.memory_space<vmem>>, vector<1x1x4xf32>
      tpu.vector_store %arg6[%c0_46, %c0_47, %c0_48], %85 {strides = array<i32>} : memref<1x1x4xf32, #tpu.memory_space<vmem>>, vector<1x1x4xf32>,
      %cst_49 = arith.constant 0.000000e+00 : f32
      %87 = vector.broadcast %cst_49 : f32 to vector<1x1x4xf32>
      %c0_50 = arith.constant 0 : index
      %c0_51 = arith.constant 0 : index
      %c0_52 = arith.constant 0 : index
      %88 = vector.load %arg7[%c0_50, %c0_51, %c0_52] : memref<1x1x4xf32, #tpu.memory_space<vmem>>, vector<1x1x4xf32>
      tpu.vector_store %arg7[%c0_50, %c0_51, %c0_52], %87 {strides = array<i32>} : memref<1x1x4xf32, #tpu.memory_space<vmem>>, vector<1x1x4xf32>,
      %cst_53 = arith.constant 0.000000e+00 : f32
      %89 = vector.broadcast %cst_53 : f32 to vector<1x1x4xf32>
      %c0_54 = arith.constant 0 : index
      %c0_55 = arith.constant 0 : index
      %c0_56 = arith.constant 0 : index
      %90 = vector.load %arg8[%c0_54, %c0_55, %c0_56] : memref<1x1x4xf32, #tpu.memory_space<vmem>>, vector<1x1x4xf32>
      tpu.vector_store %arg8[%c0_54, %c0_55, %c0_56], %89 {strides = array<i32>} : memref<1x1x4xf32, #tpu.memory_space<vmem>>, vector<1x1x4xf32>,
    } else {
    }
    %c0 = arith.constant 0 : index
    %c0_1 = arith.constant 0 : index
    %c0_2 = arith.constant 0 : index
    %3 = vector.load %arg3[%c0, %c0_1, %c0_2] : memref<1x4x128xf32, #tpu.memory_space<vmem>>, vector<1x4x128xf32>
    %c0_3 = arith.constant 0 : index
    %c0_4 = arith.constant 0 : index
    %c0_5 = arith.constant 0 : index
    %4 = vector.load %arg4[%c0_3, %c0_4, %c0_5] : memref<1x1x128xi32, #tpu.memory_space<vmem>>, vector<1x1x128xi32>
    %c0_6 = arith.constant 0 : index
    %c0_7 = arith.constant 0 : index
    %c0_8 = arith.constant 0 : index
    %5 = vector.load %arg5[%c0_6, %c0_7, %c0_8] : memref<1x1x128xf32, #tpu.memory_space<vmem>>, vector<1x1x128xf32>
    %cst = arith.constant dense<0xFF800000> : vector<1x128xf32>
    %6 = vector.multi_reduction <maximumf>, %3, %cst [1] : vector<1x4x128xf32> to vector<1x128xf32>
    %7 = vector.shape_cast %6 : vector<1x128xf32> to vector<1x1x128xf32>
    %8 = vector.broadcast %7 : vector<1x1x128xf32> to vector<1x4x128xf32>
    %9 = arith.subf %3, %8 : vector<1x4x128xf32>
    %10 = math.exp %9 : vector<1x4x128xf32>
    %cst_9 = arith.constant dense<0.000000e+00> : vector<1x128xf32>
    %11 = vector.multi_reduction <add>, %10, %cst_9 [1] : vector<1x4x128xf32> to vector<1x128xf32>
    %12 = vector.shape_cast %11 : vector<1x128xf32> to vector<1x1x128xf32>
    %13 = tpu.reciprocal %12 {approx = true} : vector<1x1x128xf32> -> vector<1x1x128xf32>
    %14 = vector.broadcast %13 : vector<1x1x128xf32> to vector<1x4x128xf32>
    %15 = arith.mulf %10, %14 : vector<1x4x128xf32>
    %16 = tpu.iota {dimensions = array<i32: 1>} : vector<1x4x128xi32>
    %17 = vector.broadcast %4 : vector<1x1x128xi32> to vector<1x4x128xi32>
    %18 = arith.cmpi eq, %16, %17 : vector<1x4x128xi32>
    %19 = arith.extui %18 : vector<1x4x128xi1> to vector<1x4x128xi32>
    %20 = arith.sitofp %19 : vector<1x4x128xi32> to vector<1x4x128xf32>
    %21 = vector.broadcast %5 : vector<1x1x128xf32> to vector<1x4x128xf32>
    %22 = arith.mulf %15, %21 : vector<1x4x128xf32>
    %c0_10 = arith.constant 0 : index
    %c0_11 = arith.constant 0 : index
    %c0_12 = arith.constant 0 : index
    %23 = vector.load %arg6[%c0_10, %c0_11, %c0_12] : memref<1x1x4xf32, #tpu.memory_space<vmem>>, vector<1x1x4xf32>
    %24 = arith.mulf %22, %20 : vector<1x4x128xf32>
    %cst_13 = arith.constant dense<0.000000e+00> : vector<1x4xf32>
    %25 = vector.multi_reduction <add>, %24, %cst_13 [2] : vector<1x4x128xf32> to vector<1x4xf32>
    %26 = vector.shape_cast %25 : vector<1x4xf32> to vector<1x1x4xf32>
    %27 = arith.addf %23, %26 : vector<1x1x4xf32>
    %c0_14 = arith.constant 0 : index
    %c0_15 = arith.constant 0 : index
    %c0_16 = arith.constant 0 : index
    %28 = vector.load %arg6[%c0_14, %c0_15, %c0_16] : memref<1x1x4xf32, #tpu.memory_space<vmem>>, vector<1x1x4xf32>
    tpu.vector_store %arg6[%c0_14, %c0_15, %c0_16], %27 {strides = array<i32>} : memref<1x1x4xf32, #tpu.memory_space<vmem>>, vector<1x1x4xf32>,
    %c0_17 = arith.constant 0 : index
    %c0_18 = arith.constant 0 : index
    %c0_19 = arith.constant 0 : index
    %29 = vector.load %arg7[%c0_17, %c0_18, %c0_19] : memref<1x1x4xf32, #tpu.memory_space<vmem>>, vector<1x1x4xf32>
    %cst_20 = arith.constant dense<0.000000e+00> : vector<1x4xf32>
    %30 = vector.multi_reduction <add>, %22, %cst_20 [2] : vector<1x4x128xf32> to vector<1x4xf32>
    %31 = vector.shape_cast %30 : vector<1x4xf32> to vector<1x1x4xf32>
    %32 = arith.addf %29, %31 : vector<1x1x4xf32>
    %c0_21 = arith.constant 0 : index
    %c0_22 = arith.constant 0 : index
    %c0_23 = arith.constant 0 : index
    %33 = vector.load %arg7[%c0_21, %c0_22, %c0_23] : memref<1x1x4xf32, #tpu.memory_space<vmem>>, vector<1x1x4xf32>
    tpu.vector_store %arg7[%c0_21, %c0_22, %c0_23], %32 {strides = array<i32>} : memref<1x1x4xf32, #tpu.memory_space<vmem>>, vector<1x1x4xf32>,
    %c0_24 = arith.constant 0 : index
    %c0_25 = arith.constant 0 : index
    %c0_26 = arith.constant 0 : index
    %34 = vector.load %arg8[%c0_24, %c0_25, %c0_26] : memref<1x1x4xf32, #tpu.memory_space<vmem>>, vector<1x1x4xf32>
    %35 = vector.broadcast %5 : vector<1x1x128xf32> to vector<1x4x128xf32>
    %36 = arith.mulf %20, %35 : vector<1x4x128xf32>
    %cst_27 = arith.constant dense<0.000000e+00> : vector<1x4xf32>
    %37 = vector.multi_reduction <add>, %36, %cst_27 [2] : vector<1x4x128xf32> to vector<1x4xf32>
    %38 = vector.shape_cast %37 : vector<1x4xf32> to vector<1x1x4xf32>
    %39 = arith.addf %34, %38 : vector<1x1x4xf32>
    %c0_28 = arith.constant 0 : index
    %c0_29 = arith.constant 0 : index
    %c0_30 = arith.constant 0 : index
    %40 = vector.load %arg8[%c0_28, %c0_29, %c0_30] : memref<1x1x4xf32, #tpu.memory_space<vmem>>, vector<1x1x4xf32>
    tpu.vector_store %arg8[%c0_28, %c0_29, %c0_30], %39 {strides = array<i32>} : memref<1x1x4xf32, #tpu.memory_space<vmem>>, vector<1x1x4xf32>,
    %41 = vector.shape_cast %4 : vector<1x1x128xi32> to vector<1x128xi32>
    %42 = arith.mulf %20, %9 : vector<1x4x128xf32>
    %cst_31 = arith.constant dense<0.000000e+00> : vector<1x128xf32>
    %43 = vector.multi_reduction <add>, %42, %cst_31 [1] : vector<1x4x128xf32> to vector<1x128xf32>
    %44 = math.log %12 : vector<1x1x128xf32>
    %45 = vector.shape_cast %44 : vector<1x1x128xf32> to vector<1x128xf32>
    %cst_32 = arith.constant 0.000000e+00 : f32
    %46 = vector.broadcast %cst_32 : f32 to vector<1x128xf32>
    %c0_i32_33 = arith.constant 0 : i32
    %47 = vector.broadcast %c0_i32_33 : i32 to vector<1x128xi32>
    %48 = arith.cmpi eq, %41, %47 : vector<1x128xi32>
    %c0_34 = arith.constant 0 : index
    %49 = memref.load %arg2[%c0_34] : memref<4xf32, #tpu.memory_space<smem>>
    %cst_35 = arith.constant 0.000000e+00 : f32
    %50 = vector.broadcast %49 : f32 to vector<1x128xf32>
    %51 = vector.broadcast %cst_35 : f32 to vector<1x128xf32>
    %52 = arith.select %48, %50, %51 : vector<1x128xi1>, vector<1x128xf32>
    %53 = arith.addf %46, %52 : vector<1x128xf32>
    %c1_i32 = arith.constant 1 : i32
    %54 = vector.broadcast %c1_i32 : i32 to vector<1x128xi32>
    %55 = arith.cmpi eq, %41, %54 : vector<1x128xi32>
    %c1 = arith.constant 1 : index
    %56 = memref.load %arg2[%c1] : memref<4xf32, #tpu.memory_space<smem>>
    %cst_36 = arith.constant 0.000000e+00 : f32
    %57 = vector.broadcast %56 : f32 to vector<1x128xf32>
    %58 = vector.broadcast %cst_36 : f32 to vector<1x128xf32>
    %59 = arith.select %55, %57, %58 : vector<1x128xi1>, vector<1x128xf32>
    %60 = arith.addf %53, %59 : vector<1x128xf32>
    %c2_i32 = arith.constant 2 : i32
    %61 = vector.broadcast %c2_i32 : i32 to vector<1x128xi32>
    %62 = arith.cmpi eq, %41, %61 : vector<1x128xi32>
    %c2 = arith.constant 2 : index
    %63 = memref.load %arg2[%c2] : memref<4xf32, #tpu.memory_space<smem>>
    %cst_37 = arith.constant 0.000000e+00 : f32
    %64 = vector.broadcast %63 : f32 to vector<1x128xf32>
    %65 = vector.broadcast %cst_37 : f32 to vector<1x128xf32>
    %66 = arith.select %62, %64, %65 : vector<1x128xi1>, vector<1x128xf32>
    %67 = arith.addf %60, %66 : vector<1x128xf32>
    %c3_i32 = arith.constant 3 : i32
    %68 = vector.broadcast %c3_i32 : i32 to vector<1x128xi32>
    %69 = arith.cmpi eq, %41, %68 : vector<1x128xi32>
    %c3 = arith.constant 3 : index
    %70 = memref.load %arg2[%c3] : memref<4xf32, #tpu.memory_space<smem>>
    %cst_38 = arith.constant 0.000000e+00 : f32
    %71 = vector.broadcast %70 : f32 to vector<1x128xf32>
    %72 = vector.broadcast %cst_38 : f32 to vector<1x128xf32>
    %73 = arith.select %69, %71, %72 : vector<1x128xi1>, vector<1x128xf32>
    %74 = arith.addf %67, %73 : vector<1x128xf32>
    %cst_39 = arith.constant 0.000000e+00 : f32
    %75 = vector.broadcast %cst_39 : f32 to vector<1x128xf32>
    %76 = arith.subf %75, %74 : vector<1x128xf32>
    %77 = arith.subf %43, %45 : vector<1x128xf32>
    %78 = arith.mulf %76, %77 : vector<1x128xf32>
    %c0_i32_40 = arith.constant 0 : i32
    %79 = vector.broadcast %c0_i32_40 : i32 to vector<1x128xi32>
    %80 = arith.cmpi ne, %41, %79 : vector<1x128xi32>
    %cst_41 = arith.constant 0.000000e+00 : f32
    %81 = vector.broadcast %cst_41 : f32 to vector<1x128xf32>
    %82 = arith.select %80, %78, %81 : vector<1x128xi1>, vector<1x128xf32>
    %83 = vector.shape_cast %82 : vector<1x128xf32> to vector<1x1x128xf32>
    %c0_42 = arith.constant 0 : index
    %c0_43 = arith.constant 0 : index
    %c0_44 = arith.constant 0 : index
    %84 = vector.load %arg9[%c0_42, %c0_43, %c0_44] : memref<1x1x128xf32, #tpu.memory_space<vmem>>, vector<1x1x128xf32>
    tpu.vector_store %arg9[%c0_42, %c0_43, %c0_44], %83 {strides = array<i32>} : memref<1x1x128xf32, #tpu.memory_space<vmem>>, vector<1x1x128xf32>,
    return
  }
  func.func @transform_0(%arg0: i32, %arg1: i32, %arg2: memref<4xf32, #tpu.memory_space<smem>>) -> (i32, i32, i32) {
    %c0_i32 = arith.constant 0 : i32
    %c0_i32_0 = arith.constant 0 : i32
    return %arg0, %c0_i32, %arg1 : i32, i32, i32
  }
  func.func @transform_1(%arg0: i32, %arg1: i32, %arg2: memref<4xf32, #tpu.memory_space<smem>>) -> (i32, i32, i32) {
    %c0_i32 = arith.constant 0 : i32
    %c0_i32_0 = arith.constant 0 : i32
    return %arg0, %c0_i32, %arg1 : i32, i32, i32
  }
  func.func @transform_2(%arg0: i32, %arg1: i32, %arg2: memref<4xf32, #tpu.memory_space<smem>>) -> (i32, i32, i32) {
    %c0_i32 = arith.constant 0 : i32
    %c0_i32_0 = arith.constant 0 : i32
    return %arg0, %c0_i32, %arg1 : i32, i32, i32
  }
  func.func @transform_3(%arg0: i32, %arg1: i32, %arg2: memref<4xf32, #tpu.memory_space<smem>>) -> (i32, i32, i32) {
    %c0_i32 = arith.constant 0 : i32
    %c0_i32_0 = arith.constant 0 : i32
    %c0_i32_1 = arith.constant 0 : i32
    return %arg0, %c0_i32, %c0_i32_0 : i32, i32, i32
  }
  func.func @transform_4(%arg0: i32, %arg1: i32, %arg2: memref<4xf32, #tpu.memory_space<smem>>) -> (i32, i32, i32) {
    %c0_i32 = arith.constant 0 : i32
    %c0_i32_0 = arith.constant 0 : i32
    %c0_i32_1 = arith.constant 0 : i32
    return %arg0, %c0_i32, %c0_i32_0 : i32, i32, i32
  }
  func.func @transform_5(%arg0: i32, %arg1: i32, %arg2: memref<4xf32, #tpu.memory_space<smem>>) -> (i32, i32, i32) {
    %c0_i32 = arith.constant 0 : i32
    %c0_i32_0 = arith.constant 0 : i32
    %c0_i32_1 = arith.constant 0 : i32
    return %arg0, %c0_i32, %c0_i32_0 : i32, i32, i32
  }
  func.func @transform_6(%arg0: i32, %arg1: i32, %arg2: memref<4xf32, #tpu.memory_space<smem>>) -> (i32, i32, i32) {
    %c0_i32 = arith.constant 0 : i32
    %c0_i32_0 = arith.constant 0 : i32
    return %arg0, %c0_i32, %arg1 : i32, i32, i32
  }
}

</mosaic_0001>

<llo_original>
// kernel: tpu_custom_call.1
$region0: #{tpu_custom_call.1}
  #allocation0 [shape = 'u32[]', space=smem, size = 0x4, offset = 0x4, fixed_abs, tag = 'smem constant byte address 0x4 - core index']
  #allocation1 [shape = 'u32[144,128]{1,0:T(1,128)}', space=vmem, size = 0x12000, scoped, tag = 'internal scratch']
  #allocation2 [shape = 's32[1]{0}', space=sflag, size = 0x4, scoped, tag = 'scoped memory for tpu_custom_call.1']
  #allocation3 [shape = 'u8[512]{0}', space=smem, size = 0x200, scoped, tag = 'prefetched SMEM operand 0']
  %s0 = inlined_call_operand.hbm [shape: f32[4], index: 0, kind: input, shape index: {}]
  %s1 = inlined_call_operand.hbm [shape: f32[2,4,256], index: 1, kind: input, shape index: {}]
  %s2 = inlined_call_operand.hbm [shape: s32[2,1,256], index: 2, kind: input, shape index: {}]
  %s3 = inlined_call_operand.vmem [shape: f32[2,1,256], index: 3, kind: input, shape index: {}]
  %s4 = inlined_call_operand.hbm [shape: f32[2,1,4], index: 4, kind: output, shape index: {0}]
  %s5 = inlined_call_operand.hbm [shape: f32[2,1,4], index: 5, kind: output, shape index: {1}]
  %s6 = inlined_call_operand.hbm [shape: f32[2,1,4], index: 6, kind: output, shape index: {2}]
  %s7 = inlined_call_operand.hbm [shape: f32[2,1,256], index: 7, kind: output, shape index: {3}]
  %8 = xla_tuple %s4, %s5, %s6, %s7
  %s9 = sld [smem:[#allocation0]]
  $region81: #{tpu_custom_call.1} parent=0
    _
  %s11 = ssub.s32 1, %s9
  %s12 = scalar_select 0, %s11, %s9
  %14 = dma.hbm_to_smem %s0, 16, [#allocation3], [#allocation2]
  %15 = dma.done [#allocation2], 16
  %16 = sfence
  $region1: #{tpu_custom_call.1} parent=0
    #allocation4 [shape = 'u8[4096]{0}', space=vmem, size = 0x1000, scoped, tag = 'input window, operand 1']
    #allocation5 [shape = 's32[2]{0}', space=sflag, size = 0x8, scoped, tag = 'scoped memory for tpu_custom_call.1']
    #allocation6 [shape = 's32[2]{0}', space=sflag, size = 0x8, scoped, tag = 'scoped memory for tpu_custom_call.1']
    #allocation7 [shape = 'u8[1024]{0}', space=vmem, size = 0x400, scoped, tag = 'input window, operand 2']
    #allocation8 [shape = 's32[2]{0}', space=sflag, size = 0x8, scoped, tag = 'scoped memory for tpu_custom_call.1']
    #allocation9 [shape = 'u8[1024]{0}', space=vmem, size = 0x400, scoped, tag = 'output window, operand 0']
    #allocation10 [shape = 'u8[1024]{0}', space=vmem, size = 0x400, scoped, tag = 'output window, operand 1']
    #allocation11 [shape = 's32[2]{0}', space=sflag, size = 0x8, scoped, tag = 'scoped memory for tpu_custom_call.1']
    #allocation12 [shape = 'u8[1024]{0}', space=vmem, size = 0x400, scoped, tag = 'output window, operand 2']
    #allocation13 [shape = 'u8[1024]{0}', space=vmem, size = 0x400, scoped, tag = 'output window, operand 3']
    #allocation14 [shape = 's32[2]{0}', space=sflag, size = 0x8, scoped, tag = 'scoped memory for tpu_custom_call.1']
    %17 = vsyncpa [#allocation5], 0
    %s18 = scalar_lea.sflag [#allocation5], 1
    %19 = vsyncpa %s18, 0
    %20 = vsyncpa [#allocation8], 0
    %s21 = scalar_lea.sflag [#allocation8], 1
    %22 = vsyncpa %s21, 0
    %23 = vsyncpa [#allocation6], 0
    %s24 = scalar_lea.sflag [#allocation6], 1
    %25 = vsyncpa %s24, 0
    %26 = vsyncpa [#allocation11], 0
    %s27 = scalar_lea.sflag [#allocation11], 1
    %28 = vsyncpa %s27, 0
    %29 = vsyncpa [#allocation14], 0
    %s30 = scalar_lea.sflag [#allocation14], 1
    %31 = vsyncpa %s30, 0
    loop: start=0, step=1, limit=6
    $region2: #{tpu_custom_call.1} parent=1 // loop_pre_header
      _
    $region3: #{tpu_custom_call.1} parent=1 // loop_header
      %s33 = sphi 0, %s37
      %p34 = scmp.ge.s32.totalorder %s33, 6
      %s40 = sphi 0, %s52
      %s41 = sphi 0, %s48
      %s42 = sphi 0, %s40
      %s43 = sphi 0, %s41
      %s44 = sphi 0, %s42
      %s45 = sphi 0, %s43
      %s57 = sphi 0, %s59
      %s60 = sphi 0, %s57
      %s61 = sphi 0, %s60
      %s77 = sphi 0, %s61
      %s85 = sphi 0, %s87
      %s88 = sphi 0, %s85
      %s89 = sphi 0, %s88
      %s105 = sphi 0, %s89
      %s113 = sphi 0, %s115
      %s116 = sphi 0, %s113
      %s117 = sphi 0, %s116
      %s133 = sphi 0, %s117
      %s139 = sphi 0, %s141
      %s142 = sphi 0, %s139
      %s143 = sphi 0, %s142
      %s159 = sphi 0, %s143
      %s165 = sphi 0, %s167
      %s168 = sphi 0, %s165
      %s169 = sphi 0, %s168
      %s185 = sphi 0, %s169
      %s191 = sphi 0, %s193
      %s194 = sphi 0, %s191
      %s195 = sphi 0, %s194
      %s211 = sphi 0, %s195
      %s219 = sphi 0, %s221
      %s222 = sphi 0, %s219
      %s223 = sphi 0, %s222
      %s239 = sphi 0, %s223
    $region4: #{tpu_custom_call.1} parent=1 // loop_header_branch
      %36 = sbr.rel (%p34) target = $region8
    $region5: #{tpu_custom_call.1} parent=1 // loop_body
      %s38 = ssub.s32 %s33, 1
      %s39 = ssub.s32 %s33, 2
      %s46 = sadd.s32 1, %s41
      %p47 = scmp.ge.s32.totalorder %s46, 2
      %s48 = scalar_select %p47, 0, %s46
      %s49 = sadd.s32 1, %s40
      %s50 = scalar_select %p47, %s49, %s40
      %p51 = scmp.ge.s32.totalorder %s50, 2
      %s52 = scalar_select %p51, 0, %s50
      %s53 = ssub.s32 %s40, %s52
      %s54 = ssub.s32 %s41, %s48
      %s55 = sor.u32 %s53, %s54
      %p56 = scmp.eq.s32.totalorder %s55, 0
      %s58 = sadd.s32 %s57, 1
      %s59 = scalar_select %p56, %s57, %s58
      %p62 = pneg %p56
      %p63 = scmp.eq.s32.totalorder %s33, 3
      %p64 = por %p62, %p63
      %p65 = scmp.ne.s32.totalorder %s57, %s60
      %p66 = scmp.eq.s32.totalorder %s33, 0
      %p67 = por %p65, %p66
      %p68 = scmp.ne.s32.totalorder %s57, %s60
      %p69 = scmp.eq.s32.totalorder %s38, 3
      %p70 = por %p68, %p69
      %p71 = scmp.ne.s32.totalorder %s60, %s61
      %p72 = scmp.eq.s32.totalorder %s38, 0
      %p73 = por %p71, %p72
      %p74 = scmp.ne.s32.totalorder %s60, %s61
      %p75 = scmp.eq.s32.totalorder %s39, 3
      %p76 = por %p74, %p75
      %p78 = scmp.ne.s32.totalorder %s61, %s77
      %p79 = scmp.eq.s32.totalorder %s39, 0
      %p80 = por %p78, %p79
      %s81 = ssub.s32 %s40, %s52
      %s82 = ssub.s32 %s41, %s48
      %s83 = sor.u32 %s81, %s82
      %p84 = scmp.eq.s32.totalorder %s83, 0
      %s86 = sadd.s32 %s85, 1
      %s87 = scalar_select %p84, %s85, %s86
      %p90 = pneg %p84
      %p91 = scmp.eq.s32.totalorder %s33, 3
      %p92 = por %p90, %p91
      %p93 = scmp.ne.s32.totalorder %s85, %s88
      %p94 = scmp.eq.s32.totalorder %s33, 0
      %p95 = por %p93, %p94
      %p96 = scmp.ne.s32.totalorder %s85, %s88
      %p97 = scmp.eq.s32.totalorder %s38, 3
      %p98 = por %p96, %p97
      %p99 = scmp.ne.s32.totalorder %s88, %s89
      %p100 = scmp.eq.s32.totalorder %s38, 0
      %p101 = por %p99, %p100
      %p102 = scmp.ne.s32.totalorder %s88, %s89
      %p103 = scmp.eq.s32.totalorder %s39, 3
      %p104 = por %p102, %p103
      %p106 = scmp.ne.s32.totalorder %s89, %s105
      %p107 = scmp.eq.s32.totalorder %s39, 0
      %p108 = por %p106, %p107
      %s109 = ssub.s32 %s40, %s52
      %s110 = ssub.s32 %s41, %s48
      %s111 = sor.u32 %s109, %s110
      %p112 = scmp.eq.s32.totalorder %s111, 0
      %s114 = sadd.s32 %s113, 1
      %s115 = scalar_select %p112, %s113, %s114
      %p118 = pneg %p112
      %p119 = scmp.eq.s32.totalorder %s33, 3
      %p120 = por %p118, %p119
      %p121 = scmp.ne.s32.totalorder %s113, %s116
      %p122 = scmp.eq.s32.totalorder %s33, 0
      %p123 = por %p121, %p122
      %p124 = scmp.ne.s32.totalorder %s113, %s116
      %p125 = scmp.eq.s32.totalorder %s38, 3
      %p126 = por %p124, %p125
      %p127 = scmp.ne.s32.totalorder %s116, %s117
      %p128 = scmp.eq.s32.totalorder %s38, 0
      %p129 = por %p127, %p128
      %p130 = scmp.ne.s32.totalorder %s116, %s117
      %p131 = scmp.eq.s32.totalorder %s39, 3
      %p132 = por %p130, %p131
      %p134 = scmp.ne.s32.totalorder %s117, %s133
      %p135 = scmp.eq.s32.totalorder %s39, 0
      %p136 = por %p134, %p135
      %s137 = ssub.s32 %s40, %s52
      %p138 = scmp.eq.s32.totalorder %s137, 0
      %s140 = sadd.s32 %s139, 1
      %s141 = scalar_select %p138, %s139, %s140
      %p144 = pneg %p138
      %p145 = scmp.eq.s32.totalorder %s33, 3
      %p146 = por %p144, %p145
      %p147 = scmp.ne.s32.totalorder %s139, %s142
      %p148 = scmp.eq.s32.totalorder %s33, 0
      %p149 = por %p147, %p148
      %p150 = scmp.ne.s32.totalorder %s139, %s142
      %p151 = scmp.eq.s32.totalorder %s38, 3
      %p152 = por %p150, %p151
      %p153 = scmp.ne.s32.totalorder %s142, %s143
      %p154 = scmp.eq.s32.totalorder %s38, 0
      %p155 = por %p153, %p154
      %p156 = scmp.ne.s32.totalorder %s142, %s143
      %p157 = scmp.eq.s32.totalorder %s39, 3
      %p158 = por %p156, %p157
      %p160 = scmp.ne.s32.totalorder %s143, %s159
      %p161 = scmp.eq.s32.totalorder %s39, 0
      %p162 = por %p160, %p161
      %s163 = ssub.s32 %s40, %s52
      %p164 = scmp.eq.s32.totalorder %s163, 0
      %s166 = sadd.s32 %s165, 1
      %s167 = scalar_select %p164, %s165, %s166
      %p170 = pneg %p164
      %p171 = scmp.eq.s32.totalorder %s33, 3
      %p172 = por %p170, %p171
      %p173 = scmp.ne.s32.totalorder %s165, %s168
      %p174 = scmp.eq.s32.totalorder %s33, 0
      %p175 = por %p173, %p174
      %p176 = scmp.ne.s32.totalorder %s165, %s168
      %p177 = scmp.eq.s32.totalorder %s38, 3
      %p178 = por %p176, %p177
      %p179 = scmp.ne.s32.totalorder %s168, %s169
      %p180 = scmp.eq.s32.totalorder %s38, 0
      %p181 = por %p179, %p180
      %p182 = scmp.ne.s32.totalorder %s168, %s169
      %p183 = scmp.eq.s32.totalorder %s39, 3
      %p184 = por %p182, %p183
      %p186 = scmp.ne.s32.totalorder %s169, %s185
      %p187 = scmp.eq.s32.totalorder %s39, 0
      %p188 = por %p186, %p187
      %s189 = ssub.s32 %s40, %s52
      %p190 = scmp.eq.s32.totalorder %s189, 0
      %s192 = sadd.s32 %s191, 1
      %s193 = scalar_select %p190, %s191, %s192
      %p196 = pneg %p190
      %p197 = scmp.eq.s32.totalorder %s33, 3
      %p198 = por %p196, %p197
      %p199 = scmp.ne.s32.totalorder %s191, %s194
      %p200 = scmp.eq.s32.totalorder %s33, 0
      %p201 = por %p199, %p200
      %p202 = scmp.ne.s32.totalorder %s191, %s194
      %p203 = scmp.eq.s32.totalorder %s38, 3
      %p204 = por %p202, %p203
      %p205 = scmp.ne.s32.totalorder %s194, %s195
      %p206 = scmp.eq.s32.totalorder %s38, 0
      %p207 = por %p205, %p206
      %p208 = scmp.ne.s32.totalorder %s194, %s195
      %p209 = scmp.eq.s32.totalorder %s39, 3
      %p210 = por %p208, %p209
      %p212 = scmp.ne.s32.totalorder %s195, %s211
      %p213 = scmp.eq.s32.totalorder %s39, 0
      %p214 = por %p212, %p213
      %s215 = ssub.s32 %s40, %s52
      %s216 = ssub.s32 %s41, %s48
      %s217 = sor.u32 %s215, %s216
      %p218 = scmp.eq.s32.totalorder %s217, 0
      %s220 = sadd.s32 %s219, 1
      %s221 = scalar_select %p218, %s219, %s220
      %p224 = pneg %p218
      %p225 = scmp.eq.s32.totalorder %s33, 3
      %p226 = por %p224, %p225
      %p227 = scmp.ne.s32.totalorder %s219, %s222
      %p228 = scmp.eq.s32.totalorder %s33, 0
      %p229 = por %p227, %p228
      %p230 = scmp.ne.s32.totalorder %s219, %s222
      %p231 = scmp.eq.s32.totalorder %s38, 3
      %p232 = por %p230, %p231
      %p233 = scmp.ne.s32.totalorder %s222, %s223
      %p234 = scmp.eq.s32.totalorder %s38, 0
      %p235 = por %p233, %p234
      %p236 = scmp.ne.s32.totalorder %s222, %s223
      %p237 = scmp.eq.s32.totalorder %s39, 3
      %p238 = por %p236, %p237
      %p240 = scmp.ne.s32.totalorder %s223, %s239
      %p241 = scmp.eq.s32.totalorder %s39, 0
      %p242 = por %p240, %p241
      %p243 = scmp.le.s32.totalorder 1, %s33
      %p244 = scmp.lt.s32.totalorder %s33, 5
      %p245 = pnand %p243, %p244
      %p246 = pneg %p245
      // Predicated region
      $region9: #{tpu_custom_call.1} parent=5 // pred_check
        _
      $region10: #{tpu_custom_call.1} parent=5 // pred_check_branch
        %248 = sbr.rel (%p245) target = $region12
      $region11: #{tpu_custom_call.1} parent=5 // pred_region
        %s249 = ssub.s32 %s33, 1
      $region12: #{tpu_custom_call.1} parent=5 // pred_fallthru
        _
      %p250 = scmp.lt.s32.totalorder %s33, 4
      // Predicated region
      $region13: #{tpu_custom_call.1} parent=5 // pred_check
        %p251 = pneg %p250
      $region14: #{tpu_custom_call.1} parent=5 // pred_check_branch
        %253 = sbr.rel (%p251) target = $region16
      $region15: #{tpu_custom_call.1} parent=5 // pred_region
        // Predicated region
        $region17: #{tpu_custom_call.1} parent=15 // pred_check
          %p254 = pneg %p67
        $region18: #{tpu_custom_call.1} parent=15 // pred_check_branch
          %256 = sbr.rel (%p254) target = $region20
        $region19: #{tpu_custom_call.1} parent=15 // pred_region
          %s257 = sand.u32 %s57, 1
          %s258 = scalar_lea.sflag [#allocation5], %s257
          %s259 = sand.u32 %s57, 1
          %s260 = smul.addr %s259, 4
          %s261 = scalar_lea.vmem [#allocation4], %s260
          %s263 = ssub.s32 64, 64
          %264 = vsyncadd %s258, %s263
          %s265 = smul.addr %s40, 2
          %s266 = sadd.s32 %s41, %s265
          %s267 = smul.addr %s266, 64
          %s268 = scalar_lea.hbm %s1, %s267
          %s270 = sshll.u32 %s261, 4
          %s271 = int_to_ptr.vmem [resolvable:$true] %s270
          %273 = dma.hbm_to_vmem [thread:$0]  %s268, 64, %s271, %s258
        $region20: #{tpu_custom_call.1} parent=15 // pred_fallthru
          _
        // Predicated region
        $region21: #{tpu_custom_call.1} parent=15 // pred_check
          %p274 = pneg %p95
        $region22: #{tpu_custom_call.1} parent=15 // pred_check_branch
          %276 = sbr.rel (%p274) target = $region24
        $region23: #{tpu_custom_call.1} parent=15 // pred_region
          %s277 = sand.u32 %s85, 1
          %s278 = scalar_lea.sflag [#allocation8], %s277
          %s279 = sand.u32 %s85, 1
          %s280 = scalar_lea.vmem [#allocation7], %s279
          %s282 = ssub.s32 16, 16
          %283 = vsyncadd %s278, %s282
          %s284 = smul.addr %s40, 2
          %s285 = sadd.s32 %s41, %s284
          %s286 = smul.addr %s285, 16
          %s287 = scalar_lea.hbm %s2, %s286
          %s289 = sshll.u32 %s280, 4
          %s290 = int_to_ptr.vmem [resolvable:$true] %s289
          %292 = dma.hbm_to_vmem [thread:$0]  %s287, 16, %s290, %s278
        $region24: #{tpu_custom_call.1} parent=15 // pred_fallthru
          _
        // Predicated region
        $region25: #{tpu_custom_call.1} parent=15 // pred_check
          %p293 = pneg %p123
        $region26: #{tpu_custom_call.1} parent=15 // pred_check_branch
          %295 = sbr.rel (%p293) target = $region28
        $region27: #{tpu_custom_call.1} parent=15 // pred_region
          %p296 = scmp.lt.s32.totalorder %s40, 1
          %s297 = scalar_select %p296, %s40, 1
          %p298 = scmp.lt.s32.totalorder %s41, 1
          %s299 = scalar_select %p298, %s41, 1
          %s300 = smul.addr %s297, 2
          %s301 = sadd.s32 %s299, %s300
          %s302 = scalar_lea.vmem %s3, %s301
        $region28: #{tpu_custom_call.1} parent=15 // pred_fallthru
          _
      $region16: #{tpu_custom_call.1} parent=5 // pred_fallthru
        _
      %p303 = scmp.le.s32.totalorder 1, %s33
      %p304 = scmp.lt.s32.totalorder %s33, 5
      %p305 = pnand %p303, %p304
      %p306 = pneg %p305
      // Predicated region
      $region29: #{tpu_custom_call.1} parent=5 // pred_check
        _
      $region30: #{tpu_custom_call.1} parent=5 // pred_check_branch
        %308 = sbr.rel (%p305) target = $region32
      $region31: #{tpu_custom_call.1} parent=5 // pred_region
        %s309 = ssub.s32 %s33, 1
        %s310 = sand.u32 %s60, 1
        %s311 = scalar_lea.sflag [#allocation5], %s310
        %s312 = sand.u32 %s60, 1
        %s313 = smul.addr %s312, 4
        %s314 = scalar_lea.vmem [#allocation4], %s313
        // Predicated region
        $region33: #{tpu_custom_call.1} parent=31 // pred_check
          %p315 = pneg %p73
        $region34: #{tpu_custom_call.1} parent=31 // pred_check_branch
          %317 = sbr.rel (%p315) target = $region36
        $region35: #{tpu_custom_call.1} parent=31 // pred_region
          %318 = dma.done %s311, 64
        $region36: #{tpu_custom_call.1} parent=31 // pred_fallthru
          _
        %s319 = sand.u32 %s88, 1
        %s320 = scalar_lea.sflag [#allocation8], %s319
        %s321 = sand.u32 %s88, 1
        %s322 = scalar_lea.vmem [#allocation7], %s321
        // Predicated region
        $region37: #{tpu_custom_call.1} parent=31 // pred_check
          %p323 = pneg %p101
        $region38: #{tpu_custom_call.1} parent=31 // pred_check_branch
          %325 = sbr.rel (%p323) target = $region40
        $region39: #{tpu_custom_call.1} parent=31 // pred_region
          %326 = dma.done %s320, 16
        $region40: #{tpu_custom_call.1} parent=31 // pred_fallthru
          _
        %s327 = sand.u32 %s60, 1
        %s328 = scalar_lea.sflag [#allocation5], %s327
        %s329 = sand.u32 %s60, 1
        %s330 = smul.addr %s329, 4
        %s331 = scalar_lea.vmem [#allocation4], %s330
        %p332 = pneg %p73
        %p333 = pneg %p70
        %s334 = sand.u32 %s88, 1
        %s335 = scalar_lea.sflag [#allocation8], %s334
        %s336 = sand.u32 %s88, 1
        %s337 = scalar_lea.vmem [#allocation7], %s336
        %p338 = pneg %p101
        %p339 = pneg %p98
        %p340 = scmp.lt.s32.totalorder %s42, 1
        %s341 = scalar_select %p340, %s42, 1
        %p342 = scmp.lt.s32.totalorder %s43, 1
        %s343 = scalar_select %p342, %s43, 1
        %s344 = smul.addr %s341, 2
        %s345 = sadd.s32 %s343, %s344
        %s346 = scalar_lea.vmem %s3, %s345
        %p347 = pneg %p129
        %p348 = pneg %p126
        %p349 = pneg %p155
        %p350 = pneg %p152
        %s351 = sand.u32 %s142, 1
        %s352 = scalar_lea.sflag [#allocation6], %s351
        %s353 = sand.u32 %s142, 1
        %s354 = scalar_lea.vmem [#allocation9], %s353
        %p355 = pneg %p181
        %p356 = pneg %p178
        %s357 = sand.u32 %s38, 1
        %s358 = scalar_lea.sflag [#allocation11], %s357
        %s359 = sand.u32 %s168, 1
        %s360 = scalar_lea.vmem [#allocation10], %s359
        %p361 = pneg %p207
        %p362 = pneg %p204
        %s363 = sand.u32 %s38, 1
        %s364 = scalar_lea.sflag [#allocation11], %s363
        %s365 = sand.u32 %s194, 1
        %s366 = scalar_lea.vmem [#allocation12], %s365
        %p367 = pneg %p235
        %p368 = pneg %p232
        %s369 = sand.u32 %s222, 1
        %s370 = scalar_lea.sflag [#allocation14], %s369
        %s371 = sand.u32 %s222, 1
        %s372 = scalar_lea.vmem [#allocation13], %s371
        %p373 = scmp.lt.s32.totalorder %s42, 1
        %s374 = scalar_select %p373, %s42, 1
        %p375 = scmp.lt.s32.totalorder %s43, 1
        %s376 = scalar_select %p375, %s43, 1
        %s377 = smul.addr %s374, 2
        %s378 = sadd.s32 %s376, %s377
        %s379 = scalar_lea.vmem %s3, %s378
        %p380 = scmp.eq.s32.totalorder %s43, 0
        // Predicated region
        $region41: #{tpu_custom_call.1} parent=31 // pred_check
          %p381 = pneg %p380
        $region42: #{tpu_custom_call.1} parent=31 // pred_check_branch
          %383 = sbr.rel (%p381) target = $region44
        $region43: #{tpu_custom_call.1} parent=31 // pred_region
          %vm384 = vcmask 24576
          %385 = vst.msk [vmem:[%s354] sm:$0x1] %vm384, 0.0
          %386 = vst.msk [vmem:[%s360] sm:$0x1] %vm384, 0.0
          %387 = vst.msk [vmem:[%s366] sm:$0x1] %vm384, 0.0
        $region44: #{tpu_custom_call.1} parent=31 // pred_fallthru
          _
        %v388 = vld [vmem:[%s314] sm:$0xf]
        %v389 = vld [vmem:[%s322] sm:$0x1]
        %v390 = vld [vmem:[%s379] sm:$0x1]
        %vm391 = vcmask 1043456
        %v392 = vsel %vm391, %v388, -inf
        %v393 = vrot.slane %v392, 4
        %v394 = vmax.f32 %v392, %v393
        %v395 = vrot.slane %v394, 2
        %v396 = vmax.f32 %v394, %v395
        %v397 = vrot.slane %v396, 1
        %v398 = vmax.f32 %v396, %v397
        %v399 = vsub.f32 %v388, %v398
        %v400 = vmul.f32 %v399, 1.442695
        %v401 = vpow.pop %v400
        %v402 = vsel %vm391, %v401, 0.0
        %v403 = vrot.slane %v402, 4
        %v404 = vadd.f32 %v402, %v403
        %v405 = vrot.slane %v404, 2
        %v406 = vadd.f32 %v404, %v405
        %v407 = vrot.slane %v406, 1
        %v408 = vadd.f32 %v406, %v407
        %v409 = vrcp.pop %v408
        %v410 = vmul.f32 %v401, %v409
        %v411 = vlaneseq
        %v412 = vshrl.u32 %v411, 7
        %v413 = vlaneseq
        %v414 = vshrl.u32 %v413, 7
        %v415 = vsub.s32 0, %v414
        %v416 = vrot.slane %v389, %v415
        %vm417 = vcmp.eq.s32.totalorder %v412, %v416
        %v418 = vsel %vm417, 1, 0
        %v419 = vcvt.s32.f32 %v418
        %v421 = vlaneseq
        %v422 = vshrl.u32 %v421, 7
        %v423 = vsub.s32 0, %v422
        %v424 = vrot.slane %v390, %v423
        %v426 = vmul.f32 %v410, %v424
        %v427 = vld [vmem:[%s354] sm:$0x1]
        %v428 = vmul.f32 %v426, %v419
        %v429 = vsel %vm391, %v428, 0.0
        %430 = vadd.xlane.f32.xlu0 %v429
        %v431 = vpop.xlane.xlu0 %430
        %v433 = vlaneseq
        %v434 = vshrl.u32 %v433, 7
        %v435 = vsub.s32 0, %v434
        %v436 = vrot.slane %v431, %v435
        %v437 = vlaneseq
        %v438 = vshrl.u32 %v437, 7
        %v439 = vsub.s32 1, %v438
        %v440 = vrot.slane %v431, %v439
        %v441 = vlaneseq
        %v442 = vshrl.u32 %v441, 7
        %v443 = vsub.s32 2, %v442
        %v444 = vrot.slane %v431, %v443
        %v445 = vlaneseq
        %v446 = vshrl.u32 %v445, 7
        %v447 = vsub.s32 3, %v446
        %v448 = vrot.slane %v431, %v447
        %v449 = vcombine.low %v436, %v440
        %v450 = vcombine.low %v444, %v448
        %v452 = vunpack.c.l.s4 1966171168
        %v453 = vunpack.c.0.s8 %v452
        %v454 = vlaneseq
        %v455 = vshrl.u32 %v454, 7
        %v456 = vsub.s32 %v453, %v455
        %v457 = vrot.slane %v449, %v456
        %v459 = vunpack.c.l.s4 1966171168
        %v460 = vunpack.c.0.s8 %v459
        %v461 = vlaneseq
        %v462 = vshrl.u32 %v461, 7
        %v463 = vsub.s32 %v460, %v462
        %v464 = vrot.slane %v450, %v463
        %v465 = vcombine.low %v457, %v464
        %v467 = vunpack.c.l.s4 1966171168
        %v468 = vunpack.c.0.s8 %v467
        %v469 = vlaneseq
        %v470 = vshrl.u32 %v469, 7
        %v471 = vsub.s32 %v468, %v470
        %v472 = vrot.slane %v465, %v471
        %473 = vset.pattern.permute.xlu0 0
        %474 = vperm.xlu0 %473, %v472
        %v475 = vpop.permute.xlu0 %474
        %v476 = vlaneseq
        %v477 = vand.u32 %v476, 127
        %v478 = vlaneseq
        %v479 = vshrl.u32 %v478, 7
        %v480 = vsub.s32 %v477, %v479
        %v481 = vrot.slane %v475, %v480
        %v483 = vunpack.c.l.s4 1966171168
        %v484 = vunpack.c.0.s8 %v483
        %v485 = vlaneseq
        %v486 = vshrl.u32 %v485, 7
        %v487 = vsub.s32 %v484, %v486
        %v488 = vrot.slane %v481, %v487
        %v490 = vunpack.c.l.s4 1966171168
        %v491 = vunpack.c.0.s8 %v490
        %v492 = vlaneseq
        %v493 = vshrl.u32 %v492, 7
        %v494 = vsub.s32 %v491, %v493
        %v495 = vrot.slane %v488, %v494
        %v497 = vadd.f32 %v427, %v495
        %vm498 = vcmask 24576
        %499 = vst.msk [vmem:[%s354] sm:$0x1] %vm498, %v497
        %v500 = vld [vmem:[%s360] sm:$0x1]
        %v501 = vsel %vm391, %v426, 0.0
        %502 = vadd.xlane.f32.xlu0 %v501
        %v503 = vpop.xlane.xlu0 %502
        %v505 = vlaneseq
        %v506 = vshrl.u32 %v505, 7
        %v507 = vsub.s32 0, %v506
        %v508 = vrot.slane %v503, %v507
        %v509 = vlaneseq
        %v510 = vshrl.u32 %v509, 7
        %v511 = vsub.s32 1, %v510
        %v512 = vrot.slane %v503, %v511
        %v513 = vlaneseq
        %v514 = vshrl.u32 %v513, 7
        %v515 = vsub.s32 2, %v514
        %v516 = vrot.slane %v503, %v515
        %v517 = vlaneseq
        %v518 = vshrl.u32 %v517, 7
        %v519 = vsub.s32 3, %v518
        %v520 = vrot.slane %v503, %v519
        %v521 = vcombine.low %v508, %v512
        %v522 = vcombine.low %v516, %v520
        %v524 = vunpack.c.l.s4 1966171168
        %v525 = vunpack.c.0.s8 %v524
        %v526 = vlaneseq
        %v527 = vshrl.u32 %v526, 7
        %v528 = vsub.s32 %v525, %v527
        %v529 = vrot.slane %v521, %v528
        %v531 = vunpack.c.l.s4 1966171168
        %v532 = vunpack.c.0.s8 %v531
        %v533 = vlaneseq
        %v534 = vshrl.u32 %v533, 7
        %v535 = vsub.s32 %v532, %v534
        %v536 = vrot.slane %v522, %v535
        %v537 = vcombine.low %v529, %v536
        %v539 = vunpack.c.l.s4 1966171168
        %v540 = vunpack.c.0.s8 %v539
        %v541 = vlaneseq
        %v542 = vshrl.u32 %v541, 7
        %v543 = vsub.s32 %v540, %v542
        %v544 = vrot.slane %v537, %v543
        %545 = vset.pattern.permute.xlu0 0
        %546 = vperm.xlu0 %545, %v544
        %v547 = vpop.permute.xlu0 %546
        %v548 = vlaneseq
        %v549 = vshrl.u32 %v548, 7
        %v550 = vsub.s32 %v477, %v549
        %v551 = vrot.slane %v547, %v550
        %v553 = vunpack.c.l.s4 1966171168
        %v554 = vunpack.c.0.s8 %v553
        %v555 = vlaneseq
        %v556 = vshrl.u32 %v555, 7
        %v557 = vsub.s32 %v554, %v556
        %v558 = vrot.slane %v551, %v557
        %v560 = vunpack.c.l.s4 1966171168
        %v561 = vunpack.c.0.s8 %v560
        %v562 = vlaneseq
        %v563 = vshrl.u32 %v562, 7
        %v564 = vsub.s32 %v561, %v563
        %v565 = vrot.slane %v558, %v564
        %v567 = vadd.f32 %v500, %v565
        %568 = vst.msk [vmem:[%s360] sm:$0x1] %vm498, %v567
        %v569 = vld [vmem:[%s366] sm:$0x1]
        %v570 = vmul.f32 %v419, %v424
        %v571 = vsel %vm391, %v570, 0.0
        %572 = vadd.xlane.f32.xlu0 %v571
        %v573 = vpop.xlane.xlu0 %572
        %v575 = vlaneseq
        %v576 = vshrl.u32 %v575, 7
        %v577 = vsub.s32 0, %v576
        %v578 = vrot.slane %v573, %v577
        %v579 = vlaneseq
        %v580 = vshrl.u32 %v579, 7
        %v581 = vsub.s32 1, %v580
        %v582 = vrot.slane %v573, %v581
        %v583 = vlaneseq
        %v584 = vshrl.u32 %v583, 7
        %v585 = vsub.s32 2, %v584
        %v586 = vrot.slane %v573, %v585
        %v587 = vlaneseq
        %v588 = vshrl.u32 %v587, 7
        %v589 = vsub.s32 3, %v588
        %v590 = vrot.slane %v573, %v589
        %v591 = vcombine.low %v578, %v582
        %v592 = vcombine.low %v586, %v590
        %v594 = vunpack.c.l.s4 1966171168
        %v595 = vunpack.c.0.s8 %v594
        %v596 = vlaneseq
        %v597 = vshrl.u32 %v596, 7
        %v598 = vsub.s32 %v595, %v597
        %v599 = vrot.slane %v591, %v598
        %v601 = vunpack.c.l.s4 1966171168
        %v602 = vunpack.c.0.s8 %v601
        %v603 = vlaneseq
        %v604 = vshrl.u32 %v603, 7
        %v605 = vsub.s32 %v602, %v604
        %v606 = vrot.slane %v592, %v605
        %v607 = vcombine.low %v599, %v606
        %v609 = vunpack.c.l.s4 1966171168
        %v610 = vunpack.c.0.s8 %v609
        %v611 = vlaneseq
        %v612 = vshrl.u32 %v611, 7
        %v613 = vsub.s32 %v610, %v612
        %v614 = vrot.slane %v607, %v613
        %615 = vset.pattern.permute.xlu0 0
        %616 = vperm.xlu0 %615, %v614
        %v617 = vpop.permute.xlu0 %616
        %v618 = vlaneseq
        %v619 = vshrl.u32 %v618, 7
        %v620 = vsub.s32 %v477, %v619
        %v621 = vrot.slane %v617, %v620
        %v623 = vunpack.c.l.s4 1966171168
        %v624 = vunpack.c.0.s8 %v623
        %v625 = vlaneseq
        %v626 = vshrl.u32 %v625, 7
        %v627 = vsub.s32 %v624, %v626
        %v628 = vrot.slane %v621, %v627
        %v630 = vunpack.c.l.s4 1966171168
        %v631 = vunpack.c.0.s8 %v630
        %v632 = vlaneseq
        %v633 = vshrl.u32 %v632, 7
        %v634 = vsub.s32 %v631, %v633
        %v635 = vrot.slane %v628, %v634
        %v637 = vadd.f32 %v569, %v635
        %638 = vst.msk [vmem:[%s366] sm:$0x1] %vm498, %v637
        %v639 = vmul.f32 %v419, %v399
        %v640 = vsel %vm391, %v639, 0.0
        %v641 = vrot.slane %v640, 4
        %v642 = vadd.f32 %v640, %v641
        %v643 = vrot.slane %v642, 2
        %v644 = vadd.f32 %v642, %v643
        %v645 = vrot.slane %v644, 1
        %v646 = vadd.f32 %v644, %v645
        %v647 = vlog2.pop %v408
        %v648 = vmul.f32 %v647, 0.6931472
        %vm649 = vcmp.eq.s32.totalorder %v389, 0
        %s650 = sld [smem:[#allocation3]]
        %v651 = vstv %s650
        %v652 = vsel %vm649, %v651, 0.0
        %v653 = vadd.f32 %v652, 0.0
        %vm654 = vcmp.eq.s32.totalorder %v389, 1
        %s655 = sld [smem:[#allocation3 + $0x1]]
        %v656 = vstv %s655
        %v657 = vsel %vm654, %v656, 0.0
        %v658 = vadd.f32 %v653, %v657
        %vm659 = vcmp.eq.s32.totalorder %v389, 2
        %s660 = sld [smem:[#allocation3 + $0x2]]
        %v661 = vstv %s660
        %v662 = vsel %vm659, %v661, 0.0
        %v663 = vadd.f32 %v658, %v662
        %vm664 = vcmp.eq.s32.totalorder %v389, 3
        %s665 = sld [smem:[#allocation3 + $0x3]]
        %v666 = vstv %s665
        %v667 = vsel %vm664, %v666, 0.0
        %v668 = vadd.f32 %v663, %v667
        %v669 = vsub.f32 0.0, %v668
        %v670 = vsub.f32 %v646, %v648
        %v671 = vmul.f32 %v669, %v670
        %vm672 = vcmp.ne.s32.totalorder %v389, 0
        %v673 = vsel %vm672, %v671, 0.0
        %674 = vst [vmem:[%s372] sm:$0x1] %v673
        %s675 = sand.u32 %s142, 1
        %s676 = scalar_lea.sflag [#allocation6], %s675
        %s677 = sand.u32 %s142, 1
        %s678 = scalar_lea.vmem [#allocation9], %s677
        %s679 = sand.u32 %s38, 1
        %s680 = scalar_lea.sflag [#allocation11], %s679
        %s681 = sand.u32 %s168, 1
        %s682 = scalar_lea.vmem [#allocation10], %s681
        %s683 = sand.u32 %s38, 1
        %s684 = scalar_lea.sflag [#allocation11], %s683
        %s685 = sand.u32 %s194, 1
        %s686 = scalar_lea.vmem [#allocation12], %s685
        %s687 = sand.u32 %s222, 1
        %s688 = scalar_lea.sflag [#allocation14], %s687
        %s689 = sand.u32 %s222, 1
        %s690 = scalar_lea.vmem [#allocation13], %s689
        // Predicated region
        $region45: #{tpu_custom_call.1} parent=31 // pred_check
          %p691 = pneg %p152
        $region46: #{tpu_custom_call.1} parent=31 // pred_check_branch
          %693 = sbr.rel (%p691) target = $region48
        $region47: #{tpu_custom_call.1} parent=31 // pred_region
          %s695 = ssub.s32 16, 16
          %696 = vsyncadd %s676, %s695
          %s697 = smul.addr %s42, 16
          %s698 = scalar_lea.hbm %s4, %s697
          %s700 = sshll.u32 %s678, 4
          %s701 = int_to_ptr.vmem [resolvable:$true] %s700
          %703 = dma.vmem_to_hbm [thread:$0]  %s701, 16, %s698, %s676
        $region48: #{tpu_custom_call.1} parent=31 // pred_fallthru
          _
        // Predicated region
        $region49: #{tpu_custom_call.1} parent=31 // pred_check
          %p704 = pneg %p178
        $region50: #{tpu_custom_call.1} parent=31 // pred_check_branch
          %706 = sbr.rel (%p704) target = $region52
        $region51: #{tpu_custom_call.1} parent=31 // pred_region
          %s708 = ssub.s32 16, 16
          %709 = vsyncadd %s680, %s708
          %s710 = smul.addr %s42, 16
          %s711 = scalar_lea.hbm %s5, %s710
          %s713 = sshll.u32 %s682, 4
          %s714 = int_to_ptr.vmem [resolvable:$true] %s713
          %716 = dma.vmem_to_hbm [thread:$0]  %s714, 16, %s711, %s680
        $region52: #{tpu_custom_call.1} parent=31 // pred_fallthru
          _
        // Predicated region
        $region53: #{tpu_custom_call.1} parent=31 // pred_check
          %p717 = pneg %p204
        $region54: #{tpu_custom_call.1} parent=31 // pred_check_branch
          %719 = sbr.rel (%p717) target = $region56
        $region55: #{tpu_custom_call.1} parent=31 // pred_region
          %s721 = ssub.s32 16, 16
          %722 = vsyncadd %s684, %s721
          %s723 = smul.addr %s42, 16
          %s724 = scalar_lea.hbm %s6, %s723
          %s726 = sshll.u32 %s686, 4
          %s727 = int_to_ptr.vmem [resolvable:$true] %s726
          %729 = dma.vmem_to_hbm [thread:$0]  %s727, 16, %s724, %s684
        $region56: #{tpu_custom_call.1} parent=31 // pred_fallthru
          _
        // Predicated region
        $region57: #{tpu_custom_call.1} parent=31 // pred_check
          %p730 = pneg %p232
        $region58: #{tpu_custom_call.1} parent=31 // pred_check_branch
          %732 = sbr.rel (%p730) target = $region60
        $region59: #{tpu_custom_call.1} parent=31 // pred_region
          %s734 = ssub.s32 16, 16
          %735 = vsyncadd %s688, %s734
          %s736 = smul.addr %s42, 2
          %s737 = sadd.s32 %s43, %s736
          %s738 = smul.addr %s737, 16
          %s739 = scalar_lea.hbm %s7, %s738
          %s741 = sshll.u32 %s690, 4
          %s742 = int_to_ptr.vmem [resolvable:$true] %s741
          %744 = dma.vmem_to_hbm [thread:$0]  %s742, 16, %s739, %s688
        $region60: #{tpu_custom_call.1} parent=31 // pred_fallthru
          _
      $region32: #{tpu_custom_call.1} parent=5 // pred_fallthru
        _
      %p745 = scmp.le.s32.totalorder 2, %s33
      // Predicated region
      $region61: #{tpu_custom_call.1} parent=5 // pred_check
        %p746 = pneg %p745
      $region62: #{tpu_custom_call.1} parent=5 // pred_check_branch
        %748 = sbr.rel (%p746) target = $region64
      $region63: #{tpu_custom_call.1} parent=5 // pred_region
        %s749 = ssub.s32 %s33, 2
        // Predicated region
        $region65: #{tpu_custom_call.1} parent=63 // pred_check
          %p750 = pneg %p158
        $region66: #{tpu_custom_call.1} parent=63 // pred_check_branch
          %752 = sbr.rel (%p750) target = $region68
        $region67: #{tpu_custom_call.1} parent=63 // pred_region
          %s753 = sand.u32 %s143, 1
          %s754 = scalar_lea.sflag [#allocation6], %s753
          %s755 = sand.u32 %s143, 1
          %s756 = scalar_lea.vmem [#allocation9], %s755
          %757 = dma.done %s754, 16
        $region68: #{tpu_custom_call.1} parent=63 // pred_fallthru
          _
        // Predicated region
        $region69: #{tpu_custom_call.1} parent=63 // pred_check
          %p758 = pneg %p184
        $region70: #{tpu_custom_call.1} parent=63 // pred_check_branch
          %760 = sbr.rel (%p758) target = $region72
        $region71: #{tpu_custom_call.1} parent=63 // pred_region
          %s761 = sand.u32 %s39, 1
          %s762 = scalar_lea.sflag [#allocation11], %s761
          %s763 = sand.u32 %s169, 1
          %s764 = scalar_lea.vmem [#allocation10], %s763
          %765 = dma.done %s762, 16
        $region72: #{tpu_custom_call.1} parent=63 // pred_fallthru
          _
        // Predicated region
        $region73: #{tpu_custom_call.1} parent=63 // pred_check
          %p766 = pneg %p210
        $region74: #{tpu_custom_call.1} parent=63 // pred_check_branch
          %768 = sbr.rel (%p766) target = $region76
        $region75: #{tpu_custom_call.1} parent=63 // pred_region
          %s769 = sand.u32 %s39, 1
          %s770 = scalar_lea.sflag [#allocation11], %s769
          %s771 = sand.u32 %s195, 1
          %s772 = scalar_lea.vmem [#allocation12], %s771
          %773 = dma.done %s770, 16
        $region76: #{tpu_custom_call.1} parent=63 // pred_fallthru
          _
        // Predicated region
        $region77: #{tpu_custom_call.1} parent=63 // pred_check
          %p774 = pneg %p238
        $region78: #{tpu_custom_call.1} parent=63 // pred_check_branch
          %776 = sbr.rel (%p774) target = $region80
        $region79: #{tpu_custom_call.1} parent=63 // pred_region
          %s777 = sand.u32 %s223, 1
          %s778 = scalar_lea.sflag [#allocation14], %s777
          %s779 = sand.u32 %s223, 1
          %s780 = scalar_lea.vmem [#allocation13], %s779
          %781 = dma.done %s778, 16
        $region80: #{tpu_custom_call.1} parent=63 // pred_fallthru
          _
      $region64: #{tpu_custom_call.1} parent=5 // pred_fallthru
        _
    $region6: #{tpu_custom_call.1} parent=1 // loop_footer
      %s37 = sadd.s32 1, %s33
    $region7: #{tpu_custom_call.1} parent=1 // loop_footer_branch
      %32 = sbr.rel target = $region3
    $region8: #{tpu_custom_call.1} parent=1 // loop_exit
      _
    %782 = vsyncpa [#allocation5], 1
    %s783 = scalar_lea.sflag [#allocation5], 1
    %784 = vsyncpa %s783, 1
    %785 = vsyncpa [#allocation8], 1
    %s786 = scalar_lea.sflag [#allocation8], 1
    %787 = vsyncpa %s786, 1
    %788 = vsyncpa [#allocation6], 1
    %s789 = scalar_lea.sflag [#allocation6], 1
    %790 = vsyncpa %s789, 1
    %791 = vsyncpa [#allocation11], 1
    %s792 = scalar_lea.sflag [#allocation11], 1
    %793 = vsyncpa %s792, 1
    %794 = vsyncpa [#allocation14], 1
    %s795 = scalar_lea.sflag [#allocation14], 1
    %796 = vsyncpa %s795, 1

</llo_original>
